<compile_context>
chip_gen: v7x
topology: tpu7x:2x2x1
jax: 0.10.0
libtpu: 0.0.40
codegen_flags: <defaults>
</compile_context>

<pallas_src>
import jax
import jax.numpy as jnp
from jax.experimental import pallas as pl
from jax.experimental.pallas import tpu as pltpu


# --- public API: true identity ------------------------------------------------
def identity_noise(noised_and_cover):
    """Exact Pallas-free equivalent of Identity.forward: return the input.

    Identity is a pure pass-through, so the fastest implementation performs no
    HBM traffic and no kernel launch.  The true roofline for this op is zero
    bytes moved.
    """
    return noised_and_cover


# --- Pallas path: direct HBM->HBM DMA copy -------------------------------------
def _make_dma_copy_kernel(n):
    """Kernel copying n HBM input refs to n HBM output refs via async DMA."""

    def kernel(*refs):
        in_refs = refs[:n]
        out_refs = refs[n:2 * n]
        sem = refs[2 * n]  # (n,) DMA semaphore array
        copies = [
            pltpu.make_async_copy(in_refs[i], out_refs[i], sem.at[i])
            for i in range(n)
        ]
        # Start every DMA before waiting on any, so all copies overlap.
        for cp in copies:
            cp.start()
        for cp in copies:
            cp.wait()

    return kernel


def _pallas_identity_copy(tensors):
    """One gridless pallas_call issuing a direct HBM->HBM DMA per tensor.

    No VMEM staging, no BlockSpec tiling, no padding: the DMA engines stream
    each tensor at HBM bandwidth regardless of shape/dtype and regardless of
    TPU generation (no scoped-VMEM concern on v5e/v6e/v7x at all).
    """
    n = len(tensors)
    any_spec = pl.BlockSpec(memory_space=pl.ANY)
    return pl.pallas_call(
        _make_dma_copy_kernel(n),
        out_shape=tuple(jax.ShapeDtypeStruct(t.shape, t.dtype) for t in tensors),
        in_specs=[any_spec] * n,
        out_specs=tuple(any_spec for _ in range(n)),
        scratch_shapes=[pltpu.SemaphoreType.DMA((n,))],
        compiler_params=pltpu.CompilerParams(has_side_effects=True),
    )(*tensors)


def identity_noise_pallas(noised_and_cover):
    """Identity materialized as an explicit Pallas HBM->HBM DMA copy."""
    is_seq = isinstance(noised_and_cover, (list, tuple))
    tensors = list(noised_and_cover) if is_seq else [noised_and_cover]

    outs = list(_pallas_identity_copy(tensors))

    if not is_seq:
        return outs[0]
    # Preserve list/tuple-ness without assuming arbitrary sequence constructors.
    if isinstance(noised_and_cover, tuple):
        return tuple(outs)
    return outs


if __name__ == "__main__":
    key = jax.random.PRNGKey(0)
    k1, k2 = jax.random.split(key)
    # Small NCHW shapes consistent with the module: batch=2, channels=4, 16x16.
    noised = jax.random.normal(k1, (2, 4, 16, 16), dtype=jnp.float32)
    cover = jax.random.normal(k2, (2, 4, 16, 16), dtype=jnp.float32)

    # Fast path: true identity, no kernel, no copy.
    fast = identity_noise([noised, cover])
    assert fast[0] is noised and fast[1] is cover

    # Pallas path: run the DMA-copy kernel once and verify bit-exactness.
    out = identity_noise_pallas([noised, cover])
    out = jax.block_until_ready(out)

    assert out[0].shape == noised.shape and out[1].shape == cover.shape
    assert out[0].dtype == noised.dtype and out[1].dtype == cover.dtype
    assert jnp.array_equal(out[0], noised) and jnp.array_equal(out[1], cover)
    print("KERNEL_OK")
</pallas_src>

<mosaic_0001>
module attributes {stable_mosaic.version = 11 : i64} {
  func.func @kernel(%arg0: memref<2x4x16x16xf32, #tpu.memory_space<any>>, %arg1: memref<2x4x16x16xf32, #tpu.memory_space<any>>, %arg2: memref<2x4x16x16xf32, #tpu.memory_space<any>>, %arg3: memref<2x4x16x16xf32, #tpu.memory_space<any>>, %arg4: memref<2x!tpu.dma_semaphore, #tpu.memory_space<semaphore_mem>>) attributes {dimension_semantics = [], scalar_prefetch = 0 : i64, scratch_operands = 1 : i64, tpu.core_type = #tpu.core_type<tc>} {
    %c0_i32 = arith.constant 0 : i32
    %0 = tpu.memref_slice %arg4[%c0_i32] : memref<2x!tpu.dma_semaphore, #tpu.memory_space<semaphore_mem>> -> memref<1x!tpu.dma_semaphore, #tpu.memory_space<semaphore_mem>>
    %1 = tpu.memref_squeeze %0 : memref<1x!tpu.dma_semaphore, #tpu.memory_space<semaphore_mem>> -> memref<!tpu.dma_semaphore, #tpu.memory_space<semaphore_mem>>
    tpu.enqueue_dma source(%arg0 : memref<2x4x16x16xf32, #tpu.memory_space<any>>) target(%arg2 : memref<2x4x16x16xf32, #tpu.memory_space<any>>) target_semaphore(%1 : memref<!tpu.dma_semaphore, #tpu.memory_space<semaphore_mem>>)
    %c1_i32 = arith.constant 1 : i32
    %2 = tpu.memref_slice %arg4[%c1_i32] : memref<2x!tpu.dma_semaphore, #tpu.memory_space<semaphore_mem>> -> memref<1x!tpu.dma_semaphore, #tpu.memory_space<semaphore_mem>>
    %3 = tpu.memref_squeeze %2 : memref<1x!tpu.dma_semaphore, #tpu.memory_space<semaphore_mem>> -> memref<!tpu.dma_semaphore, #tpu.memory_space<semaphore_mem>>
    tpu.enqueue_dma source(%arg1 : memref<2x4x16x16xf32, #tpu.memory_space<any>>) target(%arg3 : memref<2x4x16x16xf32, #tpu.memory_space<any>>) target_semaphore(%3 : memref<!tpu.dma_semaphore, #tpu.memory_space<semaphore_mem>>)
    %c0_i32_0 = arith.constant 0 : i32
    %4 = tpu.memref_slice %arg4[%c0_i32_0] : memref<2x!tpu.dma_semaphore, #tpu.memory_space<semaphore_mem>> -> memref<1x!tpu.dma_semaphore, #tpu.memory_space<semaphore_mem>>
    %5 = tpu.memref_squeeze %4 : memref<1x!tpu.dma_semaphore, #tpu.memory_space<semaphore_mem>> -> memref<!tpu.dma_semaphore, #tpu.memory_space<semaphore_mem>>
    tpu.wait_dma2 semaphore(%5 : memref<!tpu.dma_semaphore, #tpu.memory_space<semaphore_mem>>) src(%arg0 : memref<2x4x16x16xf32, #tpu.memory_space<any>>) dst(%arg2 : memref<2x4x16x16xf32, #tpu.memory_space<any>>)
    %c1_i32_1 = arith.constant 1 : i32
    %6 = tpu.memref_slice %arg4[%c1_i32_1] : memref<2x!tpu.dma_semaphore, #tpu.memory_space<semaphore_mem>> -> memref<1x!tpu.dma_semaphore, #tpu.memory_space<semaphore_mem>>
    %7 = tpu.memref_squeeze %6 : memref<1x!tpu.dma_semaphore, #tpu.memory_space<semaphore_mem>> -> memref<!tpu.dma_semaphore, #tpu.memory_space<semaphore_mem>>
    tpu.wait_dma2 semaphore(%7 : memref<!tpu.dma_semaphore, #tpu.memory_space<semaphore_mem>>) src(%arg1 : memref<2x4x16x16xf32, #tpu.memory_space<any>>) dst(%arg3 : memref<2x4x16x16xf32, #tpu.memory_space<any>>)
    return
  }
}

</mosaic_0001>

<llo_original>
// kernel: tpu_custom_call.1
$region0: #{tpu_custom_call.1}
  #allocation0 [shape = 'u32[]', space=smem, size = 0x4, offset = 0x4, fixed_abs, tag = 'smem constant byte address 0x4 - core index']
  #allocation1 [shape = 'u32[144,128]{1,0:T(1,128)}', space=vmem, size = 0x12000, scoped, tag = 'internal scratch']
  #allocation2 [shape = 's32[2]{0}', space=sflag, size = 0x8, scoped, tag = 'scratch operand']
  #allocation3 [shape = 's32[]', space=sflag, size = 0x4, offset = 0, fixed_abs, tag = 'sflag constant byte address 0x0 - dummy sync flag']
  #allocation4 [shape = 'u32[0]{0}', space=smem, size = 0, offset = 0, fixed_abs, tag = 'smem constant byte address 0x0 - null']
  #allocation5 [shape = 's32[]', space=sflag, size = 0x4, offset = 0, fixed_abs, tag = 'sflag constant byte address 0x0 - dummy sync flag']
  #allocation6 [shape = 'u32[0]{0}', space=smem, size = 0, offset = 0, fixed_abs, tag = 'smem constant byte address 0x0 - null']
  %s0 = inlined_call_operand.hbm [shape: f32[2,4,16,16], index: 0, kind: input, shape index: {}]
  %s1 = inlined_call_operand.hbm [shape: f32[2,4,16,16], index: 1, kind: input, shape index: {}]
  %s2 = inlined_call_operand.hbm [shape: f32[2,4,16,16], index: 2, kind: output, shape index: {0}]
  %s3 = inlined_call_operand.hbm [shape: f32[2,4,16,16], index: 3, kind: output, shape index: {1}]
  %4 = xla_tuple %s2, %s3
  %s5 = sld [smem:[#allocation0]]
  $region2: #{tpu_custom_call.1} parent=0
    _
  %s7 = ssub.s32 1, %s5
  %s8 = scalar_select 0, %s7, %s5
  %s10 = sshll.u32 1, 14
  %s11 = sxor.u32 4294967295, %s10
  %s14 = sshll.u32 3, 24
  %s15 = sxor.u32 4294967295, %s14
  %s16 = sand.u32 0, %s15
  %s18 = sor.u32 %s16, 0
  %21 = dma.general %s0, 2048, %s2, [#allocation2], [#allocation3], [#allocation4], %s18, 0
  %s22 = scalar_lea.sflag [#allocation2], 1
  %s24 = sshll.u32 1, 14
  %s25 = sxor.u32 4294967295, %s24
  %s28 = sshll.u32 3, 24
  %s29 = sxor.u32 4294967295, %s28
  %s30 = sand.u32 0, %s29
  %s32 = sor.u32 %s30, 0
  %35 = dma.general %s1, 2048, %s3, %s22, [#allocation5], [#allocation6], %s32, 0
  %s36 = smul.u32 2, 4
  %s37 = smul.u32 %s36, 16
  %s38 = smul.u32 %s37, 1
  %s39 = sshll.u32 %s38, 4
  %40 = dma.done [#allocation2], %s39
  %s41 = sshll.u32 %s38, 4
  %42 = dma.done %s22, %s41
  %43 = vsyncmov [#allocation2]
  %s44 = vpop.sfrf %43
  %p45 = scmp.eq.s32.totalorder %s44, 0
  %p46 = pneg %p45
  %48 = shalt.err (%p46)
  %s49 = scalar_lea.sflag [#allocation2], 1
  %50 = vsyncmov %s49
  %s51 = vpop.sfrf %50
  %p52 = scmp.eq.s32.totalorder %s51, 0
  %p53 = pneg %p52
  %55 = shalt.err (%p53)

</llo_original>
